<compile_context>
chip_gen: v6e
topology: v6e:2x2x1
jax: 0.10.0
libtpu: 0.0.40
codegen_flags: <defaults>
</compile_context>

<pallas_src>
import functools
import math

import jax
import jax.numpy as jnp
from jax.experimental import pallas as pl
from jax.experimental.pallas import tpu as pltpu


def _build_pe_table(d_model: int, max_len: int) -> jnp.ndarray:
    """Sinusoidal positional-encoding buffer, shape (max_len, d_model), f32."""
    position = jnp.arange(0, max_len, dtype=jnp.float32)[:, None]            # (L, 1)
    div_term = jnp.exp(
        jnp.arange(0, d_model, 2, dtype=jnp.float32) * (-math.log(10000.0) / d_model)
    )                                                                        # (ceil(D/2),)
    angles = position * div_term                                             # (L, ceil(D/2))
    pe = jnp.zeros((max_len, d_model), dtype=jnp.float32)
    pe = pe.at[:, 0::2].set(jnp.sin(angles))
    pe = pe.at[:, 1::2].set(jnp.cos(angles)[:, : d_model // 2])              # odd-D safe
    return pe                                                                # (L, D)


def _pe_add_kernel(x_ref, pe_ref, o_ref, *, batch: int):
    # x_ref / o_ref: (ts, B*D) lane/sublane dense.  pe_ref: (ts, D).
    pe = pe_ref[...]
    if batch > 1:
        # Broadcast pe over the batch axis with a lane concat: row layout of the
        # reshaped x is [b0's D values | b1's D values | ...], so the per-batch
        # pe block is simply repeated along lanes.
        pe = jnp.concatenate([pe] * batch, axis=-1)          # (ts, B*D)
    o_ref[...] = x_ref[...] + pe


def _choose_seq_tile(S: int, B: int, D: int, itemsize: int, *,
                     target_bytes: int, vmem_budget: int, min_steps: int = 4) -> int:
    """Seq rows per tile: ~target_bytes dense x tiles, VMEM-budgeted, >=min_steps grid."""
    row_bytes = B * D * itemsize                 # dense bytes per seq-row of x / out
    pe_row_bytes = D * itemsize
    rows = max(1, target_bytes // row_bytes)
    # Double-buffered (x_tile + out_tile) plus double-buffered pe tile, 20% headroom.
    per_row_vmem = 2 * (2 * row_bytes) + 2 * pe_row_bytes
    rows = min(rows, max(1, int(vmem_budget * 0.8) // per_row_vmem))
    # Keep >= min_steps grid steps when S permits (pipeline overlap; v7x 2-TC sharding).
    rows = min(rows, pl.cdiv(S, min_steps))
    if rows >= S:
        return S
    return min(S, max(8, (rows // 8) * 8))       # multiple of 8 when tiling


def positional_encoding_forward(x: jnp.ndarray, pe_full: jnp.ndarray,
                                seq_tile: int | None = None,
                                target_tile_bytes: int = 4 << 20,
                                vmem_limit_bytes: int = 48 * 1024 * 1024) -> jnp.ndarray:
    """x: (S, B, D); pe_full: (max_len, D). Returns x + pe[:S] (eval-mode dropout)."""
    S, B, D = x.shape
    x2 = x.reshape(S, B * D)                       # free: row-major contiguous
    pe = pe_full.astype(x.dtype)                   # native-dtype add (no f32 upcast)

    if seq_tile is None:
        ts = _choose_seq_tile(S, B, D, x.dtype.itemsize,
                              target_bytes=target_tile_bytes,
                              vmem_budget=vmem_limit_bytes)
    else:
        ts = min(int(seq_tile), S)
        if ts < S and ts % 8 != 0:
            ts = max(8, (ts // 8) * 8)

    if ts % 8 != 0:
        # Rare tiny/odd-S path (ts == S, S not a multiple of 8): make both block
        # shapes equal their full array extents so the (8,128) rule is satisfied.
        ts = S
        pe = pe[:S]

    grid = (pl.cdiv(S, ts),)
    kernel = functools.partial(_pe_add_kernel, batch=B)

    out2 = pl.pallas_call(
        kernel,
        out_shape=jax.ShapeDtypeStruct((S, B * D), x.dtype),
        grid=grid,
        in_specs=[
            pl.BlockSpec((ts, B * D), lambda i: (i, 0)),   # x: dense (ts, B*D) tiles
            pl.BlockSpec((ts, D), lambda i: (i, 0)),       # pe: only first cdiv(S,ts) blocks read
        ],
        out_specs=pl.BlockSpec((ts, B * D), lambda i: (i, 0)),
        compiler_params=pltpu.CompilerParams(
            dimension_semantics=("parallel",),             # S tiles are independent
            vmem_limit_bytes=vmem_limit_bytes,             # <=48 MiB: safe on v7x (64 MiB VMEM)
        ),
    )(x2, pe)

    return out2.reshape(S, B, D)


if __name__ == "__main__":
    d_model = 128    # lane-dense trailing dim
    max_len = 512    # small synthetic max_len (module default 5000)
    seq = 256
    batch = 2

    key = jax.random.PRNGKey(0)
    x = jax.random.normal(key, (seq, batch, d_model), dtype=jnp.float32)

    pe_full = _build_pe_table(d_model, max_len)

    # Defaults give ts = 64 here (grid = (4,)): >=4 pipelined steps, dense tiles.
    out = positional_encoding_forward(x, pe_full)
    out = jax.block_until_ready(out)

    # Reference check in plain JAX (eval-mode dropout == identity).
    ref = x + pe_full[:seq][:, None, :]
    assert out.shape == (seq, batch, d_model)
    assert jnp.allclose(out, ref, atol=1e-6), "mismatch vs reference"

    print("KERNEL_OK")
</pallas_src>

<mosaic_0001>
module attributes {stable_mosaic.version = 11 : i64} {
  func.func @_pe_add_kernel(%arg0: i32, %arg1: memref<64x256xf32, #tpu.memory_space<vmem>>, %arg2: memref<64x128xf32, #tpu.memory_space<vmem>>, %arg3: memref<64x256xf32, #tpu.memory_space<vmem>>) attributes {dimension_semantics = [#tpu.dimension_semantics<parallel>], iteration_bounds = array<i64: 4>, scalar_prefetch = 0 : i64, scratch_operands = 0 : i64, tpu.core_type = #tpu.core_type<tc>, window_params = [{transform_indices = @transform_0, window_bounds = array<i64: 64, 256>}, {transform_indices = @transform_1, window_bounds = array<i64: 64, 128>}, {transform_indices = @transform_2, window_bounds = array<i64: 64, 256>}]} {
    %c0 = arith.constant 0 : index
    %c0_0 = arith.constant 0 : index
    %0 = vector.load %arg2[%c0, %c0_0] : memref<64x128xf32, #tpu.memory_space<vmem>>, vector<64x128xf32>
    %1 = tpu.concatenate %0, %0 in 1 : vector<64x128xf32>, vector<64x128xf32> -> vector<64x256xf32>
    %c0_1 = arith.constant 0 : index
    %c0_2 = arith.constant 0 : index
    %2 = vector.load %arg1[%c0_1, %c0_2] : memref<64x256xf32, #tpu.memory_space<vmem>>, vector<64x256xf32>
    %3 = arith.addf %2, %1 : vector<64x256xf32>
    %c0_3 = arith.constant 0 : index
    %c0_4 = arith.constant 0 : index
    %4 = vector.load %arg3[%c0_3, %c0_4] : memref<64x256xf32, #tpu.memory_space<vmem>>, vector<64x256xf32>
    tpu.vector_store %arg3[%c0_3, %c0_4], %3 {strides = array<i32>} : memref<64x256xf32, #tpu.memory_space<vmem>>, vector<64x256xf32>,
    return
  }
  func.func @transform_0(%arg0: i32) -> (i32, i32) {
    %c0_i32 = arith.constant 0 : i32
    %c0_i32_0 = arith.constant 0 : i32
    return %arg0, %c0_i32 : i32, i32
  }
  func.func @transform_1(%arg0: i32) -> (i32, i32) {
    %c0_i32 = arith.constant 0 : i32
    %c0_i32_0 = arith.constant 0 : i32
    return %arg0, %c0_i32 : i32, i32
  }
  func.func @transform_2(%arg0: i32) -> (i32, i32) {
    %c0_i32 = arith.constant 0 : i32
    %c0_i32_0 = arith.constant 0 : i32
    return %arg0, %c0_i32 : i32, i32
  }
}

</mosaic_0001>

<llo_original>
// kernel: tpu_custom_call.1
$region0: #{tpu_custom_call.1}
  #allocation0 [shape = 'u32[]', space=smem, size = 0x4, offset = 0x4, fixed_abs, tag = 'smem constant byte address 0x4 - core index']
  #allocation1 [shape = 'u32[144,128]{1,0:T(1,128)}', space=vmem, size = 0x12000, scoped, tag = 'internal scratch']
  %s0 = inlined_call_operand.hbm [shape: f32[256,256], index: 0, kind: input, shape index: {}]
  %s1 = inlined_call_operand.hbm [shape: f32[512,128], index: 1, kind: input, shape index: {}]
  %s2 = inlined_call_operand.hbm [shape: f32[256,256], index: 2, kind: output, shape index: {}]
  %s3 = sld [smem:[#allocation0]]
  $region49: #{tpu_custom_call.1} parent=0
    _
  %s5 = ssub.s32 1, %s3
  %s6 = scalar_select 0, %s5, %s3
  $region1: #{tpu_custom_call.1} parent=0
    #allocation2 [shape = 'u8[131072]{0}', space=vmem, size = 0x20000, scoped, tag = 'input window, operand 0']
    #allocation3 [shape = 's32[2]{0}', space=sflag, size = 0x8, scoped, tag = 'scoped memory for tpu_custom_call.1']
    #allocation4 [shape = 's32[2]{0}', space=sflag, size = 0x8, scoped, tag = 'scoped memory for tpu_custom_call.1']
    #allocation5 [shape = 'u8[65536]{0}', space=vmem, size = 0x10000, scoped, tag = 'input window, operand 1']
    #allocation6 [shape = 's32[2]{0}', space=sflag, size = 0x8, scoped, tag = 'scoped memory for tpu_custom_call.1']
    #allocation7 [shape = 'u8[131072]{0}', space=vmem, size = 0x20000, scoped, tag = 'output window, operand 0']
    %7 = vsyncpa [#allocation3], 0
    %s8 = scalar_lea.sflag [#allocation3], 1
    %9 = vsyncpa %s8, 0
    %10 = vsyncpa [#allocation6], 0
    %s11 = scalar_lea.sflag [#allocation6], 1
    %12 = vsyncpa %s11, 0
    %13 = vsyncpa [#allocation4], 0
    %s14 = scalar_lea.sflag [#allocation4], 1
    %15 = vsyncpa %s14, 0
    loop: start=0, step=1, limit=6
    $region2: #{tpu_custom_call.1} parent=1 // loop_pre_header
      _
    $region3: #{tpu_custom_call.1} parent=1 // loop_header
      %s17 = sphi 0, %s21
      %p18 = scmp.ge.s32.totalorder %s17, 6
      %s27 = sphi 0, %s29
      %s30 = sphi 0, %s27
      %s31 = sphi 0, %s30
      %s47 = sphi 0, %s31
      %s53 = sphi 0, %s55
      %s56 = sphi 0, %s53
      %s57 = sphi 0, %s56
      %s73 = sphi 0, %s57
      %s79 = sphi 0, %s81
      %s82 = sphi 0, %s79
      %s83 = sphi 0, %s82
      %s99 = sphi 0, %s83
    $region4: #{tpu_custom_call.1} parent=1 // loop_header_branch
      %20 = sbr.rel (%p18) target = $region8
    $region5: #{tpu_custom_call.1} parent=1 // loop_body
      %s22 = ssub.s32 %s17, 1
      %s23 = ssub.s32 %s17, 2
      %s24 = sadd.s32 %s17, 1
      %s25 = ssub.s32 %s17, %s24
      %p26 = scmp.eq.s32.totalorder %s25, 0
      %s28 = sadd.s32 %s27, 1
      %s29 = scalar_select %p26, %s27, %s28
      %p32 = pneg %p26
      %p33 = scmp.eq.s32.totalorder %s17, 3
      %p34 = por %p32, %p33
      %p35 = scmp.ne.s32.totalorder %s27, %s30
      %p36 = scmp.eq.s32.totalorder %s17, 0
      %p37 = por %p35, %p36
      %p38 = scmp.ne.s32.totalorder %s27, %s30
      %p39 = scmp.eq.s32.totalorder %s22, 3
      %p40 = por %p38, %p39
      %p41 = scmp.ne.s32.totalorder %s30, %s31
      %p42 = scmp.eq.s32.totalorder %s22, 0
      %p43 = por %p41, %p42
      %p44 = scmp.ne.s32.totalorder %s30, %s31
      %p45 = scmp.eq.s32.totalorder %s23, 3
      %p46 = por %p44, %p45
      %p48 = scmp.ne.s32.totalorder %s31, %s47
      %p49 = scmp.eq.s32.totalorder %s23, 0
      %p50 = por %p48, %p49
      %s51 = ssub.s32 %s17, %s24
      %p52 = scmp.eq.s32.totalorder %s51, 0
      %s54 = sadd.s32 %s53, 1
      %s55 = scalar_select %p52, %s53, %s54
      %p58 = pneg %p52
      %p59 = scmp.eq.s32.totalorder %s17, 3
      %p60 = por %p58, %p59
      %p61 = scmp.ne.s32.totalorder %s53, %s56
      %p62 = scmp.eq.s32.totalorder %s17, 0
      %p63 = por %p61, %p62
      %p64 = scmp.ne.s32.totalorder %s53, %s56
      %p65 = scmp.eq.s32.totalorder %s22, 3
      %p66 = por %p64, %p65
      %p67 = scmp.ne.s32.totalorder %s56, %s57
      %p68 = scmp.eq.s32.totalorder %s22, 0
      %p69 = por %p67, %p68
      %p70 = scmp.ne.s32.totalorder %s56, %s57
      %p71 = scmp.eq.s32.totalorder %s23, 3
      %p72 = por %p70, %p71
      %p74 = scmp.ne.s32.totalorder %s57, %s73
      %p75 = scmp.eq.s32.totalorder %s23, 0
      %p76 = por %p74, %p75
      %s77 = ssub.s32 %s17, %s24
      %p78 = scmp.eq.s32.totalorder %s77, 0
      %s80 = sadd.s32 %s79, 1
      %s81 = scalar_select %p78, %s79, %s80
      %p84 = pneg %p78
      %p85 = scmp.eq.s32.totalorder %s17, 3
      %p86 = por %p84, %p85
      %p87 = scmp.ne.s32.totalorder %s79, %s82
      %p88 = scmp.eq.s32.totalorder %s17, 0
      %p89 = por %p87, %p88
      %p90 = scmp.ne.s32.totalorder %s79, %s82
      %p91 = scmp.eq.s32.totalorder %s22, 3
      %p92 = por %p90, %p91
      %p93 = scmp.ne.s32.totalorder %s82, %s83
      %p94 = scmp.eq.s32.totalorder %s22, 0
      %p95 = por %p93, %p94
      %p96 = scmp.ne.s32.totalorder %s82, %s83
      %p97 = scmp.eq.s32.totalorder %s23, 3
      %p98 = por %p96, %p97
      %p100 = scmp.ne.s32.totalorder %s83, %s99
      %p101 = scmp.eq.s32.totalorder %s23, 0
      %p102 = por %p100, %p101
      %p103 = scmp.le.s32.totalorder 1, %s17
      %p104 = scmp.lt.s32.totalorder %s17, 5
      %p105 = pnand %p103, %p104
      %p106 = pneg %p105
      // Predicated region
      $region9: #{tpu_custom_call.1} parent=5 // pred_check
        _
      $region10: #{tpu_custom_call.1} parent=5 // pred_check_branch
        %108 = sbr.rel (%p105) target = $region12
      $region11: #{tpu_custom_call.1} parent=5 // pred_region
        %s109 = ssub.s32 %s17, 1
      $region12: #{tpu_custom_call.1} parent=5 // pred_fallthru
        _
      %p110 = scmp.lt.s32.totalorder %s17, 4
      // Predicated region
      $region13: #{tpu_custom_call.1} parent=5 // pred_check
        %p111 = pneg %p110
      $region14: #{tpu_custom_call.1} parent=5 // pred_check_branch
        %113 = sbr.rel (%p111) target = $region16
      $region15: #{tpu_custom_call.1} parent=5 // pred_region
        // Predicated region
        $region17: #{tpu_custom_call.1} parent=15 // pred_check
          %p114 = pneg %p37
        $region18: #{tpu_custom_call.1} parent=15 // pred_check_branch
          %116 = sbr.rel (%p114) target = $region20
        $region19: #{tpu_custom_call.1} parent=15 // pred_region
          %s117 = sand.u32 %s27, 1
          %s118 = scalar_lea.sflag [#allocation3], %s117
          %s119 = sand.u32 %s27, 1
          %s120 = smul.addr %s119, 128
          %s121 = scalar_lea.vmem [#allocation2], %s120
          %s122 = smul.u32 8, %s17
          %s124 = ssub.s32 2048, 2048
          %125 = vsyncadd %s118, %s124
          %s126 = smul.addr %s122, 2
          %s127 = smul.addr %s126, 128
          %s128 = scalar_lea.hbm %s0, %s127
          %s129 = sshll.u32 %s121, 4
          %s130 = int_to_ptr.vmem [resolvable:$true] %s129
          %135 = dma.hbm_to_vmem [thread:$0]  %s128, 2048, %s130, %s118, 256, 256, 16
        $region20: #{tpu_custom_call.1} parent=15 // pred_fallthru
          _
        // Predicated region
        $region21: #{tpu_custom_call.1} parent=15 // pred_check
          %p136 = pneg %p63
        $region22: #{tpu_custom_call.1} parent=15 // pred_check_branch
          %138 = sbr.rel (%p136) target = $region24
        $region23: #{tpu_custom_call.1} parent=15 // pred_region
          %s139 = sand.u32 %s53, 1
          %s140 = scalar_lea.sflag [#allocation6], %s139
          %s141 = sand.u32 %s53, 1
          %s142 = smul.addr %s141, 64
          %s143 = scalar_lea.vmem [#allocation5], %s142
          %s144 = smul.u32 8, %s17
          %s146 = ssub.s32 1024, 1024
          %147 = vsyncadd %s140, %s146
          %s148 = smul.addr %s144, 128
          %s149 = scalar_lea.hbm %s1, %s148
          %s150 = sshll.u32 %s143, 4
          %s151 = int_to_ptr.vmem [resolvable:$true] %s150
          %156 = dma.hbm_to_vmem [thread:$0]  %s149, 1024, %s151, %s140, 128, 128, 8
        $region24: #{tpu_custom_call.1} parent=15 // pred_fallthru
          _
      $region16: #{tpu_custom_call.1} parent=5 // pred_fallthru
        _
      %p157 = scmp.le.s32.totalorder 1, %s17
      %p158 = scmp.lt.s32.totalorder %s17, 5
      %p159 = pnand %p157, %p158
      %p160 = pneg %p159
      // Predicated region
      $region25: #{tpu_custom_call.1} parent=5 // pred_check
        _
      $region26: #{tpu_custom_call.1} parent=5 // pred_check_branch
        %162 = sbr.rel (%p159) target = $region28
      $region27: #{tpu_custom_call.1} parent=5 // pred_region
        %s163 = ssub.s32 %s17, 1
        %s164 = sand.u32 %s30, 1
        %s165 = scalar_lea.sflag [#allocation3], %s164
        %s166 = sand.u32 %s30, 1
        %s167 = smul.addr %s166, 128
        %s168 = scalar_lea.vmem [#allocation2], %s167
        // Predicated region
        $region29: #{tpu_custom_call.1} parent=27 // pred_check
          %p169 = pneg %p43
        $region30: #{tpu_custom_call.1} parent=27 // pred_check_branch
          %171 = sbr.rel (%p169) target = $region32
        $region31: #{tpu_custom_call.1} parent=27 // pred_region
          %172 = dma.done %s165, 2048
        $region32: #{tpu_custom_call.1} parent=27 // pred_fallthru
          _
        %s173 = sand.u32 %s56, 1
        %s174 = scalar_lea.sflag [#allocation6], %s173
        %s175 = sand.u32 %s56, 1
        %s176 = smul.addr %s175, 64
        %s177 = scalar_lea.vmem [#allocation5], %s176
        // Predicated region
        $region33: #{tpu_custom_call.1} parent=27 // pred_check
          %p178 = pneg %p69
        $region34: #{tpu_custom_call.1} parent=27 // pred_check_branch
          %180 = sbr.rel (%p178) target = $region36
        $region35: #{tpu_custom_call.1} parent=27 // pred_region
          %181 = dma.done %s174, 1024
        $region36: #{tpu_custom_call.1} parent=27 // pred_fallthru
          _
        %s182 = sand.u32 %s30, 1
        %s183 = scalar_lea.sflag [#allocation3], %s182
        %s184 = sand.u32 %s30, 1
        %s185 = smul.addr %s184, 128
        %s186 = scalar_lea.vmem [#allocation2], %s185
        %p187 = pneg %p43
        %p188 = pneg %p40
        %s189 = sand.u32 %s56, 1
        %s190 = scalar_lea.sflag [#allocation6], %s189
        %s191 = sand.u32 %s56, 1
        %s192 = smul.addr %s191, 64
        %s193 = scalar_lea.vmem [#allocation5], %s192
        %p194 = pneg %p69
        %p195 = pneg %p66
        %p196 = pneg %p95
        %p197 = pneg %p92
        %s198 = sand.u32 %s82, 1
        %s199 = scalar_lea.sflag [#allocation4], %s198
        %s200 = sand.u32 %s82, 1
        %s201 = smul.addr %s200, 128
        %s202 = scalar_lea.vmem [#allocation7], %s201
        %s203 = smul.u32 8, %s22
        %s204 = smul.u32 8, %s22
        %s205 = smul.u32 8, %s22
        %v206 = vld [vmem:[%s177] sm:$0xff]
        %v207 = vld [vmem:[%s177 + $0x8] sm:$0xff]
        %v208 = vld [vmem:[%s177 + $0x10] sm:$0xff]
        %v209 = vld [vmem:[%s177 + $0x18] sm:$0xff]
        %v210 = vld [vmem:[%s177 + $0x20] sm:$0xff]
        %v211 = vld [vmem:[%s177 + $0x28] sm:$0xff]
        %v212 = vld [vmem:[%s177 + $0x30] sm:$0xff]
        %v213 = vld [vmem:[%s177 + $0x38] sm:$0xff]
        %v214 = vld [vmem:[%s168] sm:$0xff]
        %v215 = vld [vmem:[%s168 + $0x8] sm:$0xff]
        %v216 = vld [vmem:[%s168 + $0x10] sm:$0xff]
        %v217 = vld [vmem:[%s168 + $0x18] sm:$0xff]
        %v218 = vld [vmem:[%s168 + $0x20] sm:$0xff]
        %v219 = vld [vmem:[%s168 + $0x28] sm:$0xff]
        %v220 = vld [vmem:[%s168 + $0x30] sm:$0xff]
        %v221 = vld [vmem:[%s168 + $0x38] sm:$0xff]
        %v222 = vld [vmem:[%s168 + $0x40] sm:$0xff]
        %v223 = vld [vmem:[%s168 + $0x48] sm:$0xff]
        %v224 = vld [vmem:[%s168 + $0x50] sm:$0xff]
        %v225 = vld [vmem:[%s168 + $0x58] sm:$0xff]
        %v226 = vld [vmem:[%s168 + $0x60] sm:$0xff]
        %v227 = vld [vmem:[%s168 + $0x68] sm:$0xff]
        %v228 = vld [vmem:[%s168 + $0x70] sm:$0xff]
        %v229 = vld [vmem:[%s168 + $0x78] sm:$0xff]
        %v230 = vadd.f32 %v214, %v206
        %v231 = vadd.f32 %v215, %v206
        %v232 = vadd.f32 %v216, %v207
        %v233 = vadd.f32 %v217, %v207
        %v234 = vadd.f32 %v218, %v208
        %v235 = vadd.f32 %v219, %v208
        %v236 = vadd.f32 %v220, %v209
        %v237 = vadd.f32 %v221, %v209
        %v238 = vadd.f32 %v222, %v210
        %v239 = vadd.f32 %v223, %v210
        %v240 = vadd.f32 %v224, %v211
        %v241 = vadd.f32 %v225, %v211
        %v242 = vadd.f32 %v226, %v212
        %v243 = vadd.f32 %v227, %v212
        %v244 = vadd.f32 %v228, %v213
        %v245 = vadd.f32 %v229, %v213
        %246 = vst [vmem:[%s202] sm:$0xff] %v230
        %247 = vst [vmem:[%s202 + $0x8] sm:$0xff] %v231
        %248 = vst [vmem:[%s202 + $0x10] sm:$0xff] %v232
        %249 = vst [vmem:[%s202 + $0x18] sm:$0xff] %v233
        %250 = vst [vmem:[%s202 + $0x20] sm:$0xff] %v234
        %251 = vst [vmem:[%s202 + $0x28] sm:$0xff] %v235
        %252 = vst [vmem:[%s202 + $0x30] sm:$0xff] %v236
        %253 = vst [vmem:[%s202 + $0x38] sm:$0xff] %v237
        %254 = vst [vmem:[%s202 + $0x40] sm:$0xff] %v238
        %255 = vst [vmem:[%s202 + $0x48] sm:$0xff] %v239
        %256 = vst [vmem:[%s202 + $0x50] sm:$0xff] %v240
        %257 = vst [vmem:[%s202 + $0x58] sm:$0xff] %v241
        %258 = vst [vmem:[%s202 + $0x60] sm:$0xff] %v242
        %259 = vst [vmem:[%s202 + $0x68] sm:$0xff] %v243
        %260 = vst [vmem:[%s202 + $0x70] sm:$0xff] %v244
        %261 = vst [vmem:[%s202 + $0x78] sm:$0xff] %v245
        %s262 = sand.u32 %s82, 1
        %s263 = scalar_lea.sflag [#allocation4], %s262
        %s264 = sand.u32 %s82, 1
        %s265 = smul.addr %s264, 128
        %s266 = scalar_lea.vmem [#allocation7], %s265
        // Predicated region
        $region37: #{tpu_custom_call.1} parent=27 // pred_check
          %p267 = pneg %p92
        $region38: #{tpu_custom_call.1} parent=27 // pred_check_branch
          %269 = sbr.rel (%p267) target = $region40
        $region39: #{tpu_custom_call.1} parent=27 // pred_region
          %s270 = smul.u32 8, %s22
          %s272 = ssub.s32 2048, 2048
          %273 = vsyncadd %s263, %s272
          %s274 = smul.addr %s270, 2
          %s275 = smul.addr %s274, 128
          %s276 = scalar_lea.hbm %s2, %s275
          %s277 = sshll.u32 %s266, 4
          %s278 = int_to_ptr.vmem [resolvable:$true] %s277
          %283 = dma.vmem_to_hbm [thread:$0]  %s278, 2048, %s276, %s263, 256, 256, 16
        $region40: #{tpu_custom_call.1} parent=27 // pred_fallthru
          _
      $region28: #{tpu_custom_call.1} parent=5 // pred_fallthru
        _
      %p284 = scmp.le.s32.totalorder 2, %s17
      // Predicated region
      $region41: #{tpu_custom_call.1} parent=5 // pred_check
        %p285 = pneg %p284
      $region42: #{tpu_custom_call.1} parent=5 // pred_check_branch
        %287 = sbr.rel (%p285) target = $region44
      $region43: #{tpu_custom_call.1} parent=5 // pred_region
        %s288 = ssub.s32 %s17, 2
        // Predicated region
        $region45: #{tpu_custom_call.1} parent=43 // pred_check
          %p289 = pneg %p98
        $region46: #{tpu_custom_call.1} parent=43 // pred_check_branch
          %291 = sbr.rel (%p289) target = $region48
        $region47: #{tpu_custom_call.1} parent=43 // pred_region
          %s292 = sand.u32 %s83, 1
          %s293 = scalar_lea.sflag [#allocation4], %s292
          %s294 = sand.u32 %s83, 1
          %s295 = smul.addr %s294, 128
          %s296 = scalar_lea.vmem [#allocation7], %s295
          %297 = dma.done %s293, 2048
        $region48: #{tpu_custom_call.1} parent=43 // pred_fallthru
          _
      $region44: #{tpu_custom_call.1} parent=5 // pred_fallthru
        _
    $region6: #{tpu_custom_call.1} parent=1 // loop_footer
      %s21 = sadd.s32 1, %s17
    $region7: #{tpu_custom_call.1} parent=1 // loop_footer_branch
      %16 = sbr.rel target = $region3
    $region8: #{tpu_custom_call.1} parent=1 // loop_exit
      _
    %298 = vsyncpa [#allocation3], 1
    %s299 = scalar_lea.sflag [#allocation3], 1
    %300 = vsyncpa %s299, 1
    %301 = vsyncpa [#allocation6], 1
    %s302 = scalar_lea.sflag [#allocation6], 1
    %303 = vsyncpa %s302, 1
    %304 = vsyncpa [#allocation4], 1
    %s305 = scalar_lea.sflag [#allocation4], 1
    %306 = vsyncpa %s305, 1

</llo_original>
